<compile_context>
chip_gen: v7x
topology: tpu7x:2x2x1
jax: 0.10.0
libtpu: 0.0.40
codegen_flags: <defaults>
</compile_context>

<pallas_src>
import math

import jax
import jax.numpy as jnp
from jax import lax
from jax.experimental import pallas as pl
from jax.experimental.pallas import tpu as pltpu

_NEG = -1e30   # "minus infinity" that stays finite under f32 arithmetic


def _round_up(x, n):
    return (x + n - 1) // n * n


def _pick_batch_tile(B, override=None):
    if override is not None:
        assert B % int(override) == 0, "batch_tile must divide B"
        return int(override)
    for cand in (256, 128, 64, 32, 16, 8):
        if B % cand == 0:
            return cand
    return B


def _vmem_cap_bytes():
    """Per-generation VMEM cap: ~75% of physical, never more than 100 MiB."""
    try:
        phys = int(pltpu.get_tpu_info().vmem_capacity_bytes)
    except Exception:
        phys = 64 << 20          # conservative fallback (v7x per-TC VMEM)
    return min(int(phys * 3 // 4), 100 << 20)


def _make_train_kernel(s, c_actual, padded):
    """Single streaming pass: hard-reweight + label scatter + online LSE."""

    def kernel(x_ref, labels_ref, ctm_ref, t_ref, nll_ref, m_acc, l_acc):
        j = pl.program_id(1)              # class-tile index (innermost, "arbitrary")
        nj = pl.num_programs(1)
        bt, TC = x_ref.shape

        @pl.when(j == 0)
        def _init():
            m_acc[...] = jnp.full_like(m_acc, _NEG)
            l_acc[...] = jnp.zeros_like(l_acc)

        x = x_ref[...].astype(jnp.float32)                    # (bt, TC)
        ct = jnp.clip(x, -1.0, 1.0)
        ctm = ctm_ref[...]                                    # (bt, 1) f32
        t_new = t_ref[0, 0]                                   # scalar f32

        # tile-local one-hot: compare iota against (label - j*TC); no (bt, TC)
        # int32 column array is materialized.
        iota = lax.broadcasted_iota(jnp.int32, (bt, TC), 1)
        lab_local = labels_ref[...] - j * TC                  # (bt, 1) int32
        onehot = iota == lab_local

        hard = ct > ctm
        # label column -> cos_theta_m (wins), hard examples -> ct*(t_new+ct)
        ct2 = jnp.where(onehot, ctm,
                        jnp.where(hard, ct * (t_new + ct), ct))
        if padded:
            # garbage past C in the partial last block -> -inf before any
            # max/sum/exp (all-true for non-last tiles).
            ct2 = jnp.where(iota < (c_actual - j * TC), ct2, _NEG)

        # online LSE of s*ct2 (row max kept unscaled; s folded into exp arg)
        m_new = jnp.maximum(m_acc[...], jnp.max(ct2, axis=1, keepdims=True))
        l_acc[...] = (l_acc[...] * jnp.exp(s * (m_acc[...] - m_new))
                      + jnp.sum(jnp.exp(s * (ct2 - m_new)),
                                axis=1, keepdims=True))
        m_acc[...] = m_new

        @pl.when(j == nj - 1)
        def _finalize():
            lse = s * m_acc[...] + jnp.log(l_acc[...])        # (bt, 1)
            # target logit of the final logits == s * cos_theta_m
            nll_ref[...] = lse - s * ctm

    return kernel


def _make_eval_kernel(s, c_actual, padded):
    """Plain streaming log-sum-exp; target logit passed in from the wrapper."""

    def kernel(x_ref, tgt_ref, nll_ref, m_acc, l_acc):
        j = pl.program_id(1)
        nj = pl.num_programs(1)
        bt, TC = x_ref.shape

        @pl.when(j == 0)
        def _init():
            m_acc[...] = jnp.full_like(m_acc, _NEG)
            l_acc[...] = jnp.zeros_like(l_acc)

        x = x_ref[...].astype(jnp.float32)
        if padded:
            iota = lax.broadcasted_iota(jnp.int32, (bt, TC), 1)
            x = jnp.where(iota < (c_actual - j * TC), x, _NEG)

        m_new = jnp.maximum(m_acc[...], jnp.max(x, axis=1, keepdims=True))
        l_acc[...] = (l_acc[...] * jnp.exp(s * (m_acc[...] - m_new))
                      + jnp.sum(jnp.exp(s * (x - m_new)), axis=1, keepdims=True))
        m_acc[...] = m_new

        @pl.when(j == nj - 1)
        def _finalize():
            lse = s * m_acc[...] + jnp.log(l_acc[...])
            nll_ref[...] = lse - s * tgt_ref[...]

    return kernel


def curricular_face(inputs, labels, t, *, s=64.0, m=0.5, alpha=0.01,
                    training=True, batch_tile=None):
    """CurricularFace forward. Returns (loss, t_new).

    inputs: (B, C) cosine similarities (f32 or bf16), labels: (B,) int,
    t: scalar f32 curriculum state (PyTorch mutates self.t; returned here).
    """
    B, C = inputs.shape
    labels = labels.astype(jnp.int32)
    t = jnp.asarray(t, jnp.float32)

    # O(B) wrapper-side gather of the per-row target logits (avoids a full
    # (B, C) streaming pass in the kernel just to extract B scalars).
    tgt_raw = jnp.take_along_axis(inputs, labels[:, None], axis=1)
    tgt_raw = tgt_raw.astype(jnp.float32)                     # (B, 1)

    bt = _pick_batch_tile(B, batch_tile)
    nb = B // bt

    # Class-tile sizing from a VMEM byte budget (~2 MiB per streamed block).
    itemsize = jnp.dtype(inputs.dtype).itemsize
    cap = _vmem_cap_bytes()
    target_bytes = 2 << 20
    tc = _round_up(max(512, target_bytes // (bt * itemsize)), 128)
    tc = min(tc, _round_up(C, 128), 32768)
    # Defensive: shrink the tile if the double-buffered block + f32 working
    # set would not fit under the per-generation VMEM cap.
    while tc > 512 and (2 * bt * tc * itemsize + 6 * bt * tc * 4 + (2 << 20)
                        > int(cap * 0.8)):
        tc = _round_up(tc // 2, 128)

    nj = pl.cdiv(C, tc)
    padded = (C % tc) != 0

    usage = 2 * bt * tc * itemsize + 6 * bt * tc * 4 + (2 << 20)
    vmem_limit = int(min(cap, max(16 << 20, int(usage * 1.25))))

    smem_full = pl.BlockSpec(memory_space=pltpu.MemorySpace.SMEM)
    x_spec = pl.BlockSpec((bt, tc), lambda bi, j: (bi, j))
    row_spec = pl.BlockSpec((bt, 1), lambda bi, j: (bi, 0))
    out_shape = jax.ShapeDtypeStruct((B, 1), jnp.float32)     # per-row NLL
    scratch = [pltpu.VMEM((bt, 1), jnp.float32),              # running row max
               pltpu.VMEM((bt, 1), jnp.float32)]              # running sum of exp
    compiler_params = pltpu.CompilerParams(
        dimension_semantics=("parallel", "arbitrary"),        # batch || class-loop
        vmem_limit_bytes=vmem_limit)

    if training:
        tl = jnp.clip(tgt_raw, -1.0, 1.0)
        sin_t = jnp.sqrt(1.0 - tl * tl)
        ctm = tl * math.cos(m) - sin_t * math.sin(m)          # (B, 1) f32
        t_new = jnp.mean(tl) * alpha + (1.0 - alpha) * t      # scalar

        nll = pl.pallas_call(
            _make_train_kernel(float(s), C, padded),
            out_shape=out_shape,
            grid_spec=pltpu.PrefetchScalarGridSpec(
                num_scalar_prefetch=0,
                grid=(nb, nj),
                in_specs=[x_spec, row_spec, row_spec, smem_full],
                out_specs=row_spec,
                scratch_shapes=scratch),
            compiler_params=compiler_params,
        )(inputs, labels.reshape(B, 1), ctm, t_new.reshape(1, 1))
        return jnp.mean(nll), t_new

    nll = pl.pallas_call(
        _make_eval_kernel(float(s), C, padded),
        out_shape=out_shape,
        grid_spec=pltpu.PrefetchScalarGridSpec(
            num_scalar_prefetch=0,
            grid=(nb, nj),
            in_specs=[x_spec, row_spec],
            out_specs=row_spec,
            scratch_shapes=scratch),
        compiler_params=compiler_params,
    )(inputs, tgt_raw)
    return jnp.mean(nll), t                                   # t unchanged in eval


def _reference(inputs, labels, t, s=64.0, m=0.5, alpha=0.01, training=True):
    x = inputs.astype(jnp.float32)
    B, C = x.shape
    if not training:
        logp = jax.nn.log_softmax(s * x, axis=1)
        return -jnp.mean(logp[jnp.arange(B), labels]), jnp.asarray(t, jnp.float32)
    ct = jnp.clip(x, -1.0, 1.0)
    tl = ct[jnp.arange(B), labels][:, None]
    st = jnp.sqrt(1.0 - tl * tl)
    ctm = tl * math.cos(m) - st * math.sin(m)
    t_new = jnp.mean(tl) * alpha + (1.0 - alpha) * t
    hard = ct > ctm
    ct = jnp.where(hard, ct * (t_new + ct), ct)
    onehot = jax.nn.one_hot(labels, C, dtype=bool)
    ct = jnp.where(onehot, ctm, ct)
    logp = jax.nn.log_softmax(s * ct, axis=1)
    loss = -jnp.mean(logp[jnp.arange(B), labels])
    return loss, t_new


if __name__ == "__main__":
    s, m, t0, alpha = 64.0, 0.5, 1.0, 0.01

    def check(B, C, dtype, training, tol, batch_tile=None):
        key = jax.random.fold_in(jax.random.PRNGKey(0), B * 131071 + C + int(training))
        kx, kl = jax.random.split(key)
        x = jax.random.uniform(kx, (B, C), jnp.float32, minval=-1.0, maxval=1.0)
        x = x.astype(dtype)
        labels = jax.random.randint(kl, (B,), 0, C, dtype=jnp.int32)
        loss, t_new = curricular_face(x, labels, t0, s=s, m=m, alpha=alpha,
                                      training=training, batch_tile=batch_tile)
        jax.block_until_ready((loss, t_new))
        ref_loss, ref_t = _reference(x, labels, t0, s=s, m=m, alpha=alpha,
                                     training=training)
        assert jnp.allclose(loss, ref_loss, rtol=tol, atol=tol), \
            (B, C, dtype, training, loss, ref_loss)
        assert jnp.allclose(t_new, ref_t, rtol=1e-5, atol=1e-6), (t_new, ref_t)

    # single-tile training, f32 input
    check(8, 1024, jnp.float32, True, 1e-3)
    # ragged C (partial last tile masked in-kernel; no jnp.pad copy)
    check(8, 1000, jnp.float32, True, 1e-3)
    # bf16 input (halves HBM traffic; cast to f32 per tile inside the kernel)
    check(8, 1024, jnp.bfloat16, True, 1e-3)
    # multi-batch-tile path ("parallel" leading axis, per-row NLL partials)
    check(16, 1024, jnp.float32, True, 1e-3, batch_tile=8)
    # eval branch (streaming LSE only, t unchanged)
    check(8, 1024, jnp.float32, False, 1e-3)
    check(8, 1000, jnp.float32, False, 1e-3)

    print("KERNEL_OK")
</pallas_src>

<mosaic_0001>
module attributes {stable_mosaic.version = 11 : i64} {
  func.func @kernel(%arg0: i32, %arg1: i32, %arg2: memref<8x1024xf32, #tpu.memory_space<vmem>>, %arg3: memref<8x1xi32, #tpu.memory_space<vmem>>, %arg4: memref<8x1xf32, #tpu.memory_space<vmem>>, %arg5: memref<1x1xf32, #tpu.memory_space<smem>>, %arg6: memref<8x1xf32, #tpu.memory_space<vmem>>, %arg7: memref<8x1xf32, #tpu.memory_space<vmem>>, %arg8: memref<8x1xf32, #tpu.memory_space<vmem>>) attributes {dimension_semantics = [#tpu.dimension_semantics<parallel>, #tpu.dimension_semantics<arbitrary>], iteration_bounds = array<i64: 1, 1>, scalar_prefetch = 0 : i64, scratch_operands = 2 : i64, tpu.core_type = #tpu.core_type<tc>, window_params = [{transform_indices = @transform_0, window_bounds = array<i64: 8, 1024>}, {transform_indices = @transform_1, window_bounds = array<i64: 8, 1>}, {transform_indices = @transform_2, window_bounds = array<i64: 8, 1>}, {transform_indices = @transform_3, window_bounds = array<i64: 1, 1>}, {transform_indices = @transform_4, window_bounds = array<i64: 8, 1>}]} {
    %c0_i32 = arith.constant 0 : i32
    %0 = arith.cmpi eq, %arg1, %c0_i32 : i32
    %1 = arith.extui %0 : i1 to i32
    %c0_i32_0 = arith.constant 0 : i32
    %2 = arith.cmpi ne, %1, %c0_i32_0 : i32
    scf.if %2 {
      %cst_25 = arith.constant -1.000000e+30 : f32
      %50 = vector.broadcast %cst_25 : f32 to vector<8x1xf32>
      %c0_26 = arith.constant 0 : index
      %c0_27 = arith.constant 0 : index
      %51 = vector.load %arg7[%c0_26, %c0_27] : memref<8x1xf32, #tpu.memory_space<vmem>>, vector<8x1xf32>
      tpu.vector_store %arg7[%c0_26, %c0_27], %50 {strides = array<i32>} : memref<8x1xf32, #tpu.memory_space<vmem>>, vector<8x1xf32>,
      %cst_28 = arith.constant 0.000000e+00 : f32
      %52 = vector.broadcast %cst_28 : f32 to vector<8x1xf32>
      %c0_29 = arith.constant 0 : index
      %c0_30 = arith.constant 0 : index
      %53 = vector.load %arg8[%c0_29, %c0_30] : memref<8x1xf32, #tpu.memory_space<vmem>>, vector<8x1xf32>
      tpu.vector_store %arg8[%c0_29, %c0_30], %52 {strides = array<i32>} : memref<8x1xf32, #tpu.memory_space<vmem>>, vector<8x1xf32>,
    } else {
    }
    %c0 = arith.constant 0 : index
    %c0_1 = arith.constant 0 : index
    %3 = vector.load %arg2[%c0, %c0_1] : memref<8x1024xf32, #tpu.memory_space<vmem>>, vector<8x1024xf32>
    %cst = arith.constant -1.000000e+00 : f32
    %cst_2 = arith.constant 1.000000e+00 : f32
    %4 = vector.broadcast %cst : f32 to vector<8x1024xf32>
    %5 = arith.maximumf %4, %3 : vector<8x1024xf32>
    %6 = vector.broadcast %cst_2 : f32 to vector<8x1024xf32>
    %7 = arith.minimumf %6, %5 : vector<8x1024xf32>
    %c0_3 = arith.constant 0 : index
    %c0_4 = arith.constant 0 : index
    %8 = vector.load %arg4[%c0_3, %c0_4] : memref<8x1xf32, #tpu.memory_space<vmem>>, vector<8x1xf32>
    %c0_5 = arith.constant 0 : index
    %c0_6 = arith.constant 0 : index
    %9 = memref.load %arg5[%c0_5, %c0_6] : memref<1x1xf32, #tpu.memory_space<smem>>
    %10 = tpu.iota {dimensions = array<i32: 1>} : vector<8x1024xi32>
    %c0_7 = arith.constant 0 : index
    %c0_8 = arith.constant 0 : index
    %11 = vector.load %arg3[%c0_7, %c0_8] : memref<8x1xi32, #tpu.memory_space<vmem>>, vector<8x1xi32>
    %c1024_i32 = arith.constant 1024 : i32
    %12 = arith.muli %arg1, %c1024_i32 : i32
    %13 = vector.broadcast %12 : i32 to vector<8x1xi32>
    %14 = arith.subi %11, %13 : vector<8x1xi32>
    %15 = vector.broadcast %14 : vector<8x1xi32> to vector<8x1024xi32>
    %16 = arith.cmpi eq, %10, %15 : vector<8x1024xi32>
    %17 = vector.broadcast %8 : vector<8x1xf32> to vector<8x1024xf32>
    %18 = arith.cmpf ogt, %7, %17 : vector<8x1024xf32>
    %19 = vector.broadcast %9 : f32 to vector<8x1024xf32>
    %20 = arith.addf %19, %7 : vector<8x1024xf32>
    %21 = arith.mulf %7, %20 : vector<8x1024xf32>
    %22 = arith.select %18, %21, %7 : vector<8x1024xi1>, vector<8x1024xf32>
    %23 = vector.shape_cast %8 : vector<8x1xf32> to vector<8x1xf32>
    %24 = vector.broadcast %23 : vector<8x1xf32> to vector<8x1024xf32>
    %25 = arith.select %16, %24, %22 : vector<8x1024xi1>, vector<8x1024xf32>
    %c0_9 = arith.constant 0 : index
    %c0_10 = arith.constant 0 : index
    %26 = vector.load %arg7[%c0_9, %c0_10] : memref<8x1xf32, #tpu.memory_space<vmem>>, vector<8x1xf32>
    %cst_11 = arith.constant dense<0xFF800000> : vector<8xf32>
    %27 = vector.multi_reduction <maximumf>, %25, %cst_11 [1] : vector<8x1024xf32> to vector<8xf32>
    %28 = vector.shape_cast %27 : vector<8xf32> to vector<8x1xf32>
    %29 = arith.maximumf %26, %28 : vector<8x1xf32>
    %c0_12 = arith.constant 0 : index
    %c0_13 = arith.constant 0 : index
    %30 = vector.load %arg8[%c0_12, %c0_13] : memref<8x1xf32, #tpu.memory_space<vmem>>, vector<8x1xf32>
    %c0_14 = arith.constant 0 : index
    %c0_15 = arith.constant 0 : index
    %31 = vector.load %arg7[%c0_14, %c0_15] : memref<8x1xf32, #tpu.memory_space<vmem>>, vector<8x1xf32>
    %32 = arith.subf %31, %29 : vector<8x1xf32>
    %cst_16 = arith.constant 6.400000e+01 : f32
    %33 = vector.broadcast %cst_16 : f32 to vector<8x1xf32>
    %34 = arith.mulf %33, %32 : vector<8x1xf32>
    %35 = math.exp %34 : vector<8x1xf32>
    %36 = arith.mulf %30, %35 : vector<8x1xf32>
    %37 = vector.broadcast %29 : vector<8x1xf32> to vector<8x1024xf32>
    %38 = arith.subf %25, %37 : vector<8x1024xf32>
    %cst_17 = arith.constant 6.400000e+01 : f32
    %39 = vector.broadcast %cst_17 : f32 to vector<8x1024xf32>
    %40 = arith.mulf %39, %38 : vector<8x1024xf32>
    %41 = math.exp %40 : vector<8x1024xf32>
    %cst_18 = arith.constant dense<0.000000e+00> : vector<8xf32>
    %42 = vector.multi_reduction <add>, %41, %cst_18 [1] : vector<8x1024xf32> to vector<8xf32>
    %43 = vector.shape_cast %42 : vector<8xf32> to vector<8x1xf32>
    %44 = arith.addf %36, %43 : vector<8x1xf32>
    %c0_19 = arith.constant 0 : index
    %c0_20 = arith.constant 0 : index
    %45 = vector.load %arg8[%c0_19, %c0_20] : memref<8x1xf32, #tpu.memory_space<vmem>>, vector<8x1xf32>
    tpu.vector_store %arg8[%c0_19, %c0_20], %44 {strides = array<i32>} : memref<8x1xf32, #tpu.memory_space<vmem>>, vector<8x1xf32>,
    %c0_21 = arith.constant 0 : index
    %c0_22 = arith.constant 0 : index
    %46 = vector.load %arg7[%c0_21, %c0_22] : memref<8x1xf32, #tpu.memory_space<vmem>>, vector<8x1xf32>
    tpu.vector_store %arg7[%c0_21, %c0_22], %29 {strides = array<i32>} : memref<8x1xf32, #tpu.memory_space<vmem>>, vector<8x1xf32>,
    %c0_i32_23 = arith.constant 0 : i32
    %47 = arith.cmpi eq, %arg1, %c0_i32_23 : i32
    %48 = arith.extui %47 : i1 to i32
    %c0_i32_24 = arith.constant 0 : i32
    %49 = arith.cmpi ne, %48, %c0_i32_24 : i32
    scf.if %49 {
      %c0_25 = arith.constant 0 : index
      %c0_26 = arith.constant 0 : index
      %50 = vector.load %arg7[%c0_25, %c0_26] : memref<8x1xf32, #tpu.memory_space<vmem>>, vector<8x1xf32>
      %cst_27 = arith.constant 6.400000e+01 : f32
      %51 = vector.broadcast %cst_27 : f32 to vector<8x1xf32>
      %52 = arith.mulf %51, %50 : vector<8x1xf32>
      %c0_28 = arith.constant 0 : index
      %c0_29 = arith.constant 0 : index
      %53 = vector.load %arg8[%c0_28, %c0_29] : memref<8x1xf32, #tpu.memory_space<vmem>>, vector<8x1xf32>
      %54 = math.log %53 : vector<8x1xf32>
      %55 = arith.addf %52, %54 : vector<8x1xf32>
      %cst_30 = arith.constant 6.400000e+01 : f32
      %56 = vector.broadcast %cst_30 : f32 to vector<8x1xf32>
      %57 = arith.mulf %56, %8 : vector<8x1xf32>
      %58 = arith.subf %55, %57 : vector<8x1xf32>
      %c0_31 = arith.constant 0 : index
      %c0_32 = arith.constant 0 : index
      %59 = vector.load %arg6[%c0_31, %c0_32] : memref<8x1xf32, #tpu.memory_space<vmem>>, vector<8x1xf32>
      tpu.vector_store %arg6[%c0_31, %c0_32], %58 {strides = array<i32>} : memref<8x1xf32, #tpu.memory_space<vmem>>, vector<8x1xf32>,
    } else {
    }
    return
  }
  func.func @transform_0(%arg0: i32, %arg1: i32) -> (i32, i32) {
    %c0_i32 = arith.constant 0 : i32
    return %arg0, %arg1 : i32, i32
  }
  func.func @transform_1(%arg0: i32, %arg1: i32) -> (i32, i32) {
    %c0_i32 = arith.constant 0 : i32
    %c0_i32_0 = arith.constant 0 : i32
    return %arg0, %c0_i32 : i32, i32
  }
  func.func @transform_2(%arg0: i32, %arg1: i32) -> (i32, i32) {
    %c0_i32 = arith.constant 0 : i32
    %c0_i32_0 = arith.constant 0 : i32
    return %arg0, %c0_i32 : i32, i32
  }
  func.func @transform_3(%arg0: i32, %arg1: i32) -> (i32, i32) {
    %c0_i32 = arith.constant 0 : i32
    %c0_i32_0 = arith.constant 0 : i32
    %c0_i32_1 = arith.constant 0 : i32
    return %c0_i32, %c0_i32_0 : i32, i32
  }
  func.func @transform_4(%arg0: i32, %arg1: i32) -> (i32, i32) {
    %c0_i32 = arith.constant 0 : i32
    %c0_i32_0 = arith.constant 0 : i32
    return %arg0, %c0_i32 : i32, i32
  }
}

</mosaic_0001>

<llo_original>
// kernel: tpu_custom_call.1
$region0: #{tpu_custom_call.1}
  #allocation0 [shape = 'u32[]', space=smem, size = 0x4, offset = 0x4, fixed_abs, tag = 'smem constant byte address 0x4 - core index']
  #allocation1 [shape = 'u32[144,128]{1,0:T(1,128)}', space=vmem, size = 0x12000, scoped, tag = 'internal scratch']
  #allocation2 [shape = 'f32[8,1]{1,0:T(8,128)}', space=vmem, size = 0x1000, scoped, tag = 'scratch operand']
  #allocation3 [shape = 'f32[8,1]{1,0:T(8,128)}', space=vmem, size = 0x1000, scoped, tag = 'scratch operand']
  #allocation4 [shape = 'f32[1,1]{1,0:T(1,128)S(6)}', space=smem, size = 0x200, scoped, tag = 'scoped memory for tpu_custom_call.1']
  %s0 = inlined_call_operand.hbm [shape: f32[8,1024], index: 0, kind: input, shape index: {}]
  %s1 = inlined_call_operand.vmem [shape: s32[8,1], index: 1, kind: input, shape index: {}]
  %s2 = inlined_call_operand.vmem [shape: f32[8,1], index: 2, kind: input, shape index: {}]
  %s3 = inlined_call_operand.<no memory space> [shape: f32[1,1], index: 3, kind: input, shape index: {}]
  %s4 = inlined_call_operand.vmem [shape: f32[8,1], index: 4, kind: output, shape index: {}]
  %s5 = sld [smem:[#allocation0]]
  $region38: #{tpu_custom_call.1} parent=0
    _
  %s7 = ssub.s32 1, %s5
  %s8 = scalar_select 0, %s7, %s5
  %9 = sst [smem:[#allocation4]] %s3
  $region1: #{tpu_custom_call.1} parent=0
    #allocation5 [shape = 'u8[32768]{0}', space=vmem, size = 0x8000, scoped, tag = 'input window, operand 0, single buffered']
    #allocation6 [shape = 's32[1]{0}', space=sflag, size = 0x4, scoped, tag = 'scoped memory for tpu_custom_call.1']
    %10 = vsyncpa [#allocation6], 0
    // Predicated region
    $region2: #{tpu_custom_call.1} parent=1 // pred_check
      _
    $region3: #{tpu_custom_call.1} parent=1 // pred_check_branch
      %12 = sbr.rel (0) target = $region5
    $region4: #{tpu_custom_call.1} parent=1 // pred_region
      %s14 = ssub.s32 1024, 1024
      %15 = vsyncadd [#allocation6], %s14
      %s17 = sshll.u32 [#allocation5], 4
      %s18 = int_to_ptr.vmem [resolvable:$true] %s17
      %20 = dma.hbm_to_vmem [thread:$0]  %s0, 1024, %s18, [#allocation6]
    $region5: #{tpu_custom_call.1} parent=1 // pred_fallthru
      _
    // Predicated region
    $region6: #{tpu_custom_call.1} parent=1 // pred_check
      _
    $region7: #{tpu_custom_call.1} parent=1 // pred_check_branch
      %22 = sbr.rel (0) target = $region9
    $region8: #{tpu_custom_call.1} parent=1 // pred_region
      _
    $region9: #{tpu_custom_call.1} parent=1 // pred_fallthru
      _
    // Predicated region
    $region10: #{tpu_custom_call.1} parent=1 // pred_check
      _
    $region11: #{tpu_custom_call.1} parent=1 // pred_check_branch
      %24 = sbr.rel (0) target = $region13
    $region12: #{tpu_custom_call.1} parent=1 // pred_region
      _
    $region13: #{tpu_custom_call.1} parent=1 // pred_fallthru
      _
    // Predicated region
    $region14: #{tpu_custom_call.1} parent=1 // pred_check
      _
    $region15: #{tpu_custom_call.1} parent=1 // pred_check_branch
      %26 = sbr.rel (0) target = $region17
    $region16: #{tpu_custom_call.1} parent=1 // pred_region
      _
    $region17: #{tpu_custom_call.1} parent=1 // pred_fallthru
      _
    // Predicated region
    $region18: #{tpu_custom_call.1} parent=1 // pred_check
      _
    $region19: #{tpu_custom_call.1} parent=1 // pred_check_branch
      %28 = sbr.rel (0) target = $region21
    $region20: #{tpu_custom_call.1} parent=1 // pred_region
      %29 = dma.done [#allocation6], 1024
    $region21: #{tpu_custom_call.1} parent=1 // pred_fallthru
      _
    %p30 = scmp.eq.s32.totalorder 0, 0
    // Predicated region
    $region22: #{tpu_custom_call.1} parent=1 // pred_check
      %p31 = pneg %p30
    $region23: #{tpu_custom_call.1} parent=1 // pred_check_branch
      %33 = sbr.rel (%p31) target = $region25
    $region24: #{tpu_custom_call.1} parent=1 // pred_region
      %vm34 = vcmask 7168
      %35 = vst.msk [vmem:[#allocation2] sm:$0xff] %vm34, -1e+30
      %36 = vst.msk [vmem:[#allocation3] sm:$0xff] %vm34, 0.0
    $region25: #{tpu_custom_call.1} parent=1 // pred_fallthru
      _
    %v37 = vld [vmem:[#allocation5] sm:$0xff]
    %v38 = vld [vmem:[#allocation5 + $0x8] sm:$0xff]
    %v39 = vld [vmem:[#allocation5 + $0x10] sm:$0xff]
    %v40 = vld [vmem:[#allocation5 + $0x18] sm:$0xff]
    %v41 = vld [vmem:[#allocation5 + $0x20] sm:$0xff]
    %v42 = vld [vmem:[#allocation5 + $0x28] sm:$0xff]
    %v43 = vld [vmem:[#allocation5 + $0x30] sm:$0xff]
    %v44 = vld [vmem:[#allocation5 + $0x38] sm:$0xff]
    %v45 = vmax.f32 %v37, -1.0
    %v46 = vmax.f32 %v38, -1.0
    %v47 = vmax.f32 %v39, -1.0
    %v48 = vmax.f32 %v40, -1.0
    %v49 = vmax.f32 %v41, -1.0
    %v50 = vmax.f32 %v42, -1.0
    %v51 = vmax.f32 %v43, -1.0
    %v52 = vmax.f32 %v44, -1.0
    %v53 = vmin.f32 %v45, 1.0
    %v54 = vmin.f32 %v46, 1.0
    %v55 = vmin.f32 %v47, 1.0
    %v56 = vmin.f32 %v48, 1.0
    %v57 = vmin.f32 %v49, 1.0
    %v58 = vmin.f32 %v50, 1.0
    %v59 = vmin.f32 %v51, 1.0
    %v60 = vmin.f32 %v52, 1.0
    %v61 = vld [vmem:[%s2] sm:$0xff]
    %s62 = sld [smem:[#allocation4]]
    %v63 = vlaneseq
    %v64 = vand.u32 %v63, 127
    %v65 = vadd.s32 %v64, 128
    %v66 = vadd.s32 %v64, 256
    %v67 = vadd.s32 %v64, 384
    %v68 = vadd.s32 %v64, 512
    %v69 = vadd.s32 %v64, 640
    %v70 = vadd.s32 %v64, 768
    %v71 = vadd.s32 %v64, 896
    %v72 = vld [vmem:[%s1] sm:$0xff]
    %s73 = smul.u32 0, 1024
    %v74 = vstv %s73
    %v75 = vsub.s32 %v72, %v74
    %76 = vset.pattern.permute.xlu0 0
    %77 = vperm.xlu0 %76, %v75
    %v78 = vpop.permute.xlu0 %77
    %vm79 = vcmp.eq.s32.totalorder %v64, %v78
    %vm80 = vcmp.eq.s32.totalorder %v65, %v78
    %vm81 = vcmp.eq.s32.totalorder %v66, %v78
    %vm82 = vcmp.eq.s32.totalorder %v67, %v78
    %vm83 = vcmp.eq.s32.totalorder %v68, %v78
    %vm84 = vcmp.eq.s32.totalorder %v69, %v78
    %vm85 = vcmp.eq.s32.totalorder %v70, %v78
    %vm86 = vcmp.eq.s32.totalorder %v71, %v78
    %88 = vset.pattern.permute.xlu0 0
    %89 = vperm.xlu0 %88, %v61
    %v90 = vpop.permute.xlu0 %89
    %vm92 = vcmp.gt.f32.partialorder %v53, %v90
    %vm93 = vcmp.gt.f32.partialorder %v54, %v90
    %vm94 = vcmp.gt.f32.partialorder %v55, %v90
    %vm95 = vcmp.gt.f32.partialorder %v56, %v90
    %vm96 = vcmp.gt.f32.partialorder %v57, %v90
    %vm97 = vcmp.gt.f32.partialorder %v58, %v90
    %vm98 = vcmp.gt.f32.partialorder %v59, %v90
    %vm99 = vcmp.gt.f32.partialorder %v60, %v90
    %v100 = vstv %s62
    %v101 = vadd.f32 %v100, %v53
    %v102 = vadd.f32 %v100, %v54
    %v103 = vadd.f32 %v100, %v55
    %v104 = vadd.f32 %v100, %v56
    %v105 = vadd.f32 %v100, %v57
    %v106 = vadd.f32 %v100, %v58
    %v107 = vadd.f32 %v100, %v59
    %v108 = vadd.f32 %v100, %v60
    %v109 = vmul.f32 %v53, %v101
    %v110 = vmul.f32 %v54, %v102
    %v111 = vmul.f32 %v55, %v103
    %v112 = vmul.f32 %v56, %v104
    %v113 = vmul.f32 %v57, %v105
    %v114 = vmul.f32 %v58, %v106
    %v115 = vmul.f32 %v59, %v107
    %v116 = vmul.f32 %v60, %v108
    %v117 = vsel %vm92, %v109, %v53
    %v118 = vsel %vm93, %v110, %v54
    %v119 = vsel %vm94, %v111, %v55
    %v120 = vsel %vm95, %v112, %v56
    %v121 = vsel %vm96, %v113, %v57
    %v122 = vsel %vm97, %v114, %v58
    %v123 = vsel %vm98, %v115, %v59
    %v124 = vsel %vm99, %v116, %v60
    %v125 = vsel %vm79, %v90, %v117
    %v126 = vsel %vm80, %v90, %v118
    %v127 = vsel %vm81, %v90, %v119
    %v128 = vsel %vm82, %v90, %v120
    %v129 = vsel %vm83, %v90, %v121
    %v130 = vsel %vm84, %v90, %v122
    %v131 = vsel %vm85, %v90, %v123
    %v132 = vsel %vm86, %v90, %v124
    %v133 = vld [vmem:[#allocation2] sm:$0xff]
    %v134 = vmax.f32 %v125, %v129
    %v135 = vmax.f32 %v126, %v130
    %v136 = vmax.f32 %v127, %v131
    %v137 = vmax.f32 %v128, %v132
    %v138 = vmax.f32 %v134, %v135
    %v139 = vmax.f32 %v136, %v137
    %v140 = vmax.f32 %v138, %v139
    %141 = vmax.xlane.f32.xlu0 %v140
    %v142 = vpop.xlane.xlu0 %141
    %v143 = vmax.f32 %v133, %v142
    %v144 = vld [vmem:[#allocation3] sm:$0xff]
    %v145 = vsub.f32 %v133, %v143
    %v146 = vmul.f32 %v145, 64.0
    %v147 = vmul.f32 %v146, 1.442695
    %v148 = vpow.pop %v147
    %v149 = vmul.f32 %v144, %v148
    %151 = vset.pattern.permute.xlu0 0
    %152 = vperm.xlu0 %151, %v143
    %v153 = vpop.permute.xlu0 %152
    %v155 = vsub.f32 %v125, %v153
    %v156 = vsub.f32 %v126, %v153
    %v157 = vsub.f32 %v127, %v153
    %v158 = vsub.f32 %v128, %v153
    %v159 = vsub.f32 %v129, %v153
    %v160 = vsub.f32 %v130, %v153
    %v161 = vsub.f32 %v131, %v153
    %v162 = vsub.f32 %v132, %v153
    %v163 = vmul.f32 %v155, 64.0
    %v164 = vmul.f32 %v156, 64.0
    %v165 = vmul.f32 %v157, 64.0
    %v166 = vmul.f32 %v158, 64.0
    %v167 = vmul.f32 %v159, 64.0
    %v168 = vmul.f32 %v160, 64.0
    %v169 = vmul.f32 %v161, 64.0
    %v170 = vmul.f32 %v162, 64.0
    %v171 = vmul.f32 %v163, 1.442695
    %v172 = vpow.pop %v171
    %v173 = vmul.f32 %v164, 1.442695
    %v174 = vpow.pop %v173
    %v175 = vmul.f32 %v165, 1.442695
    %v176 = vpow.pop %v175
    %v177 = vmul.f32 %v166, 1.442695
    %v178 = vpow.pop %v177
    %v179 = vmul.f32 %v167, 1.442695
    %v180 = vpow.pop %v179
    %v181 = vmul.f32 %v168, 1.442695
    %v182 = vpow.pop %v181
    %v183 = vmul.f32 %v169, 1.442695
    %v184 = vpow.pop %v183
    %v185 = vmul.f32 %v170, 1.442695
    %v186 = vpow.pop %v185
    %v187 = vadd.f32 %v172, %v174
    %v188 = vadd.f32 %v187, %v176
    %v189 = vadd.f32 %v188, %v178
    %v190 = vadd.f32 %v189, %v180
    %v191 = vadd.f32 %v190, %v182
    %v192 = vadd.f32 %v191, %v184
    %v193 = vadd.f32 %v192, %v186
    %194 = vadd.xlane.f32.xlu0 %v193
    %v195 = vpop.xlane.xlu0 %194
    %v196 = vadd.f32 %v149, %v195
    %vm197 = vcmask 7168
    %198 = vst.msk [vmem:[#allocation3] sm:$0xff] %vm197, %v196
    %199 = vst.msk [vmem:[#allocation2] sm:$0xff] %vm197, %v143
    // Predicated region
    $region26: #{tpu_custom_call.1} parent=1 // pred_check
      %p200 = pneg %p30
    $region27: #{tpu_custom_call.1} parent=1 // pred_check_branch
      %202 = sbr.rel (%p200) target = $region29
    $region28: #{tpu_custom_call.1} parent=1 // pred_region
      %v203 = vld [vmem:[#allocation2] sm:$0xff]
      %v204 = vmul.f32 %v203, 64.0
      %v205 = vld [vmem:[#allocation3] sm:$0xff]
      %v206 = vlog2.pop %v205
      %v207 = vmul.f32 %v206, 0.6931472
      %v208 = vadd.f32 %v204, %v207
      %v209 = vmul.f32 %v61, 64.0
      %v210 = vsub.f32 %v208, %v209
      %211 = vst.msk [vmem:[%s4] sm:$0xff] %vm197, %v210
    $region29: #{tpu_custom_call.1} parent=1 // pred_fallthru
      _
    // Predicated region
    $region30: #{tpu_custom_call.1} parent=1 // pred_check
      _
    $region31: #{tpu_custom_call.1} parent=1 // pred_check_branch
      %213 = sbr.rel (0) target = $region33
    $region32: #{tpu_custom_call.1} parent=1 // pred_region
      _
    $region33: #{tpu_custom_call.1} parent=1 // pred_fallthru
      _
    // Predicated region
    $region34: #{tpu_custom_call.1} parent=1 // pred_check
      _
    $region35: #{tpu_custom_call.1} parent=1 // pred_check_branch
      %215 = sbr.rel (0) target = $region37
    $region36: #{tpu_custom_call.1} parent=1 // pred_region
      _
    $region37: #{tpu_custom_call.1} parent=1 // pred_fallthru
      _
    %216 = vsyncpa [#allocation6], 1

</llo_original>
